<compile_context>
chip_gen: v6e
topology: v6e:2x2x1
jax: 0.10.0
libtpu: 0.0.40
codegen_flags: <defaults>
</compile_context>

<pallas_src>
import jax
import jax.numpy as jnp
from jax.experimental import pallas as pl
from jax.experimental.pallas import tpu as pltpu


def _round_up(v, m):
    return ((v + m - 1) // m) * m


def _ls_ce_kernel(smoothing, n_total, tm):
    confidence = 1.0 - smoothing
    sm = float(smoothing)

    def kernel(x_ref, tgt_ref, out_ref, acc_ref):
        i = pl.program_id(0)
        nprog = pl.num_programs(0)

        @pl.when(i == 0)
        def _():
            acc_ref[...] = jnp.zeros_like(acc_ref)

        x = x_ref[...].astype(jnp.float32)        # (TM, C) -- f32 math on all gens
        tgt = tgt_ref[...]                        # (TM, 1) int32

        # Numerically stable logsumexp over the class (lane) axis.
        m = jnp.max(x, axis=-1, keepdims=True)                                  # (TM, 1)
        lse = m + jnp.log(jnp.sum(jnp.exp(x - m), axis=-1, keepdims=True))      # (TM, 1)

        # x[i, t_i] via iota-compare mask (TPU-friendly gather along lanes).
        cls_ids = jax.lax.broadcasted_iota(jnp.int32, x.shape, 1)
        x_t = jnp.sum(jnp.where(cls_ids == tgt, x, 0.0), axis=-1, keepdims=True)  # (TM, 1)

        x_mean = jnp.mean(x, axis=-1, keepdims=True)                            # (TM, 1)

        # loss_i = conf*(lse - x_t) + sm*(lse - mean(x)) = lse - conf*x_t - sm*mean(x)
        loss = lse - confidence * x_t - sm * x_mean                             # (TM, 1)

        # Mask rows past the true batch size (padding of the last tile).
        row_ids = jax.lax.broadcasted_iota(jnp.int32, loss.shape, 0) + i * tm
        loss = jnp.where(row_ids < n_total, loss, 0.0)

        acc_ref[...] += jnp.sum(loss).reshape(1, 1)

        @pl.when(i == nprog - 1)
        def _():
            out_ref[...] = acc_ref[...] * (1.0 / float(n_total))

    return kernel


def label_smoothing_cross_entropy(x, target, smoothing=0.1):
    """x: (N, C) float logits (f32 or bf16); target: (N,) int labels. Returns scalar f32."""
    n, c = x.shape
    itemsize = jnp.dtype(x.dtype).itemsize
    tgt2d = target.astype(jnp.int32).reshape(n, 1)

    # Pick the largest batch tile that keeps each x buffer ~<= 8 MiB (so two
    # pipeline buffers stay well under the smallest (v7x) VMEM), multiple of 8.
    target_block_bytes = 8 << 20
    rows = max(8, ((target_block_bytes // max(1, c * itemsize)) // 8) * 8)
    tm = int(max(8, min(rows, _round_up(n, 8), 2048)))

    grid = (pl.cdiv(n, tm),)

    # Explicit scoped-VMEM limit: 2x double-buffered tiles + headroom, clamped.
    tile_bytes = tm * c * itemsize + tm * 4
    vmem_limit = int(min(max(2 * tile_bytes + (2 << 20), 4 << 20), 48 << 20))

    cost = pl.CostEstimate(
        flops=5 * n * c,
        transcendentals=n * c,
        bytes_accessed=n * c * itemsize + n * 4 + 4,
    )

    out = pl.pallas_call(
        _ls_ce_kernel(float(smoothing), n, tm),
        out_shape=jax.ShapeDtypeStruct((1, 1), jnp.float32),
        grid_spec=pltpu.PrefetchScalarGridSpec(
            num_scalar_prefetch=0,
            grid=grid,
            in_specs=[
                pl.BlockSpec((tm, c), lambda i: (i, 0)),
                pl.BlockSpec((tm, 1), lambda i: (i, 0)),
            ],
            out_specs=pl.BlockSpec((1, 1), lambda i: (0, 0)),
            scratch_shapes=[pltpu.VMEM((1, 1), jnp.float32)],
        ),
        compiler_params=pltpu.CompilerParams(
            dimension_semantics=("arbitrary",),
            vmem_limit_bytes=vmem_limit,
        ),
        cost_estimate=cost,
    )(x, tgt2d)
    return out[0, 0]


def _reference(x, target, smoothing=0.1):
    logprobs = jax.nn.log_softmax(x.astype(jnp.float32), axis=-1)
    nll = -jnp.take_along_axis(logprobs, target[:, None], axis=-1)[:, 0]
    smooth = -jnp.mean(logprobs, axis=-1)
    return jnp.mean((1.0 - smoothing) * nll + smoothing * smooth)


if __name__ == "__main__":
    key = jax.random.PRNGKey(0)

    # Primary small test (multiple-of-8 batch).
    kx, kt = jax.random.split(key)
    N, C = 8, 32
    x = jax.random.normal(kx, (N, C), dtype=jnp.float32)
    target = jax.random.randint(kt, (N,), 0, C, dtype=jnp.int32)

    loss = label_smoothing_cross_entropy(x, target, smoothing=0.1)
    jax.block_until_ready(loss)
    ref = _reference(x, target, smoothing=0.1)
    assert jnp.allclose(loss, ref, atol=1e-5, rtol=1e-5), (loss, ref)

    # Ragged batch (exercises the padded-row mask in the last tile).
    kx2, kt2 = jax.random.split(jax.random.PRNGKey(1))
    N2, C2 = 13, 160
    x2 = jax.random.normal(kx2, (N2, C2), dtype=jnp.float32)
    t2 = jax.random.randint(kt2, (N2,), 0, C2, dtype=jnp.int32)
    loss2 = label_smoothing_cross_entropy(x2, t2, smoothing=0.1)
    jax.block_until_ready(loss2)
    ref2 = _reference(x2, t2, smoothing=0.1)
    assert jnp.allclose(loss2, ref2, atol=1e-5, rtol=1e-5), (loss2, ref2)

    print("KERNEL_OK")
</pallas_src>

<mosaic_0001>
module attributes {stable_mosaic.version = 11 : i64} {
  func.func @kernel(%arg0: i32, %arg1: memref<8x32xf32, #tpu.memory_space<vmem>>, %arg2: memref<8x1xi32, #tpu.memory_space<vmem>>, %arg3: memref<1x1xf32, #tpu.memory_space<vmem>>, %arg4: memref<1x1xf32, #tpu.memory_space<vmem>>) attributes {dimension_semantics = [#tpu.dimension_semantics<arbitrary>], iteration_bounds = array<i64: 1>, scalar_prefetch = 0 : i64, scratch_operands = 1 : i64, tpu.core_type = #tpu.core_type<tc>, window_params = [{transform_indices = @transform_0, window_bounds = array<i64: 8, 32>}, {transform_indices = @transform_1, window_bounds = array<i64: 8, 1>}, {pipeline_mode = #tpu.pipeline_mode<synchronous>, transform_indices = @transform_2, window_bounds = array<i64: 1, 1>}]} {
    %c0_i32 = arith.constant 0 : i32
    %0 = arith.cmpi eq, %arg0, %c0_i32 : i32
    %1 = arith.extui %0 : i1 to i32
    %c0_i32_0 = arith.constant 0 : i32
    %2 = arith.cmpi ne, %1, %c0_i32_0 : i32
    scf.if %2 {
      %cst_20 = arith.constant 0.000000e+00 : f32
      %50 = vector.broadcast %cst_20 : f32 to vector<1x1xf32>
      %c0_21 = arith.constant 0 : index
      %c0_22 = arith.constant 0 : index
      %51 = vector.load %arg4[%c0_21, %c0_22] : memref<1x1xf32, #tpu.memory_space<vmem>>, vector<1x1xf32>
      tpu.vector_store %arg4[%c0_21, %c0_22], %50 {strides = array<i32>} : memref<1x1xf32, #tpu.memory_space<vmem>>, vector<1x1xf32>,
    } else {
    }
    %c0 = arith.constant 0 : index
    %c0_1 = arith.constant 0 : index
    %3 = vector.load %arg1[%c0, %c0_1] : memref<8x32xf32, #tpu.memory_space<vmem>>, vector<8x32xf32>
    %c0_2 = arith.constant 0 : index
    %c0_3 = arith.constant 0 : index
    %4 = vector.load %arg2[%c0_2, %c0_3] : memref<8x1xi32, #tpu.memory_space<vmem>>, vector<8x1xi32>
    %cst = arith.constant dense<0xFF800000> : vector<8xf32>
    %5 = vector.multi_reduction <maximumf>, %3, %cst [1] : vector<8x32xf32> to vector<8xf32>
    %6 = vector.shape_cast %5 : vector<8xf32> to vector<8x1xf32>
    %7 = vector.broadcast %6 : vector<8x1xf32> to vector<8x32xf32>
    %8 = arith.subf %3, %7 : vector<8x32xf32>
    %9 = math.exp %8 : vector<8x32xf32>
    %cst_4 = arith.constant dense<0.000000e+00> : vector<8xf32>
    %10 = vector.multi_reduction <add>, %9, %cst_4 [1] : vector<8x32xf32> to vector<8xf32>
    %11 = vector.shape_cast %10 : vector<8xf32> to vector<8x1xf32>
    %12 = math.log %11 : vector<8x1xf32>
    %13 = arith.addf %6, %12 : vector<8x1xf32>
    %14 = tpu.iota {dimensions = array<i32: 1>} : vector<8x32xi32>
    %15 = vector.broadcast %4 : vector<8x1xi32> to vector<8x32xi32>
    %16 = arith.cmpi eq, %14, %15 : vector<8x32xi32>
    %cst_5 = arith.constant 0.000000e+00 : f32
    %17 = vector.broadcast %cst_5 : f32 to vector<8x32xf32>
    %18 = arith.select %16, %3, %17 : vector<8x32xi1>, vector<8x32xf32>
    %cst_6 = arith.constant dense<0.000000e+00> : vector<8xf32>
    %19 = vector.multi_reduction <add>, %18, %cst_6 [1] : vector<8x32xf32> to vector<8xf32>
    %20 = vector.shape_cast %19 : vector<8xf32> to vector<8x1xf32>
    %cst_7 = arith.constant dense<0.000000e+00> : vector<8xf32>
    %21 = vector.multi_reduction <add>, %3, %cst_7 [1] : vector<8x32xf32> to vector<8xf32>
    %22 = vector.shape_cast %21 : vector<8xf32> to vector<8x1xf32>
    %cst_8 = arith.constant 3.200000e+01 : f32
    %23 = vector.broadcast %cst_8 : f32 to vector<8x1xf32>
    %24 = arith.divf %22, %23 : vector<8x1xf32>
    %cst_9 = arith.constant 0.899999976 : f32
    %25 = vector.broadcast %cst_9 : f32 to vector<8x1xf32>
    %26 = arith.mulf %25, %20 : vector<8x1xf32>
    %27 = arith.subf %13, %26 : vector<8x1xf32>
    %cst_10 = arith.constant 1.000000e-01 : f32
    %28 = vector.broadcast %cst_10 : f32 to vector<8x1xf32>
    %29 = arith.mulf %28, %24 : vector<8x1xf32>
    %30 = arith.subf %27, %29 : vector<8x1xf32>
    %31 = tpu.iota {dimensions = array<i32: 0>} : vector<8x1xi32>
    %c8_i32 = arith.constant 8 : i32
    %32 = arith.muli %arg0, %c8_i32 : i32
    %33 = vector.broadcast %32 : i32 to vector<8x1xi32>
    %34 = arith.addi %31, %33 : vector<8x1xi32>
    %c8_i32_11 = arith.constant 8 : i32
    %35 = vector.broadcast %c8_i32_11 : i32 to vector<8x1xi32>
    %36 = arith.cmpi slt, %34, %35 : vector<8x1xi32>
    %cst_12 = arith.constant 0.000000e+00 : f32
    %37 = vector.broadcast %cst_12 : f32 to vector<8x1xf32>
    %38 = arith.select %36, %30, %37 : vector<8x1xi1>, vector<8x1xf32>
    %c0_13 = arith.constant 0 : index
    %c0_14 = arith.constant 0 : index
    %39 = vector.load %arg4[%c0_13, %c0_14] : memref<1x1xf32, #tpu.memory_space<vmem>>, vector<1x1xf32>
    %40 = vector.shape_cast %38 : vector<8x1xf32> to vector<1x8x1xf32>
    %cst_15 = arith.constant dense<0.000000e+00> : vector<1xf32>
    %41 = vector.multi_reduction <add>, %40, %cst_15 [1, 2] : vector<1x8x1xf32> to vector<1xf32>
    %42 = vector.shape_cast %41 : vector<1xf32> to vector<1x1x1xf32>
    %43 = vector.extract %42[0, 0, 0] : f32 from vector<1x1x1xf32>
    %44 = vector.broadcast %43 : f32 to vector<1x1xf32>
    %45 = arith.addf %39, %44 : vector<1x1xf32>
    %c0_16 = arith.constant 0 : index
    %c0_17 = arith.constant 0 : index
    %46 = vector.load %arg4[%c0_16, %c0_17] : memref<1x1xf32, #tpu.memory_space<vmem>>, vector<1x1xf32>
    tpu.vector_store %arg4[%c0_16, %c0_17], %45 {strides = array<i32>} : memref<1x1xf32, #tpu.memory_space<vmem>>, vector<1x1xf32>,
    %c0_i32_18 = arith.constant 0 : i32
    %47 = arith.cmpi eq, %arg0, %c0_i32_18 : i32
    %48 = arith.extui %47 : i1 to i32
    %c0_i32_19 = arith.constant 0 : i32
    %49 = arith.cmpi ne, %48, %c0_i32_19 : i32
    scf.if %49 {
      %c0_20 = arith.constant 0 : index
      %c0_21 = arith.constant 0 : index
      %50 = vector.load %arg4[%c0_20, %c0_21] : memref<1x1xf32, #tpu.memory_space<vmem>>, vector<1x1xf32>
      %cst_22 = arith.constant 1.250000e-01 : f32
      %51 = vector.broadcast %cst_22 : f32 to vector<1x1xf32>
      %52 = arith.mulf %50, %51 : vector<1x1xf32>
      %c0_23 = arith.constant 0 : index
      %c0_24 = arith.constant 0 : index
      %53 = vector.load %arg3[%c0_23, %c0_24] : memref<1x1xf32, #tpu.memory_space<vmem>>, vector<1x1xf32>
      tpu.vector_store %arg3[%c0_23, %c0_24], %52 {strides = array<i32>} : memref<1x1xf32, #tpu.memory_space<vmem>>, vector<1x1xf32>,
    } else {
    }
    return
  }
  func.func @transform_0(%arg0: i32) -> (i32, i32) {
    %c0_i32 = arith.constant 0 : i32
    %c0_i32_0 = arith.constant 0 : i32
    return %arg0, %c0_i32 : i32, i32
  }
  func.func @transform_1(%arg0: i32) -> (i32, i32) {
    %c0_i32 = arith.constant 0 : i32
    %c0_i32_0 = arith.constant 0 : i32
    return %arg0, %c0_i32 : i32, i32
  }
  func.func @transform_2(%arg0: i32) -> (i32, i32) {
    %c0_i32 = arith.constant 0 : i32
    %c0_i32_0 = arith.constant 0 : i32
    %c0_i32_1 = arith.constant 0 : i32
    return %c0_i32, %c0_i32_0 : i32, i32
  }
}

</mosaic_0001>

<llo_original>
// kernel: tpu_custom_call.1
$region0: #{tpu_custom_call.1}
  #allocation0 [shape = 'u32[]', space=smem, size = 0x4, offset = 0x4, fixed_abs, tag = 'smem constant byte address 0x4 - core index']
  #allocation1 [shape = 'u32[144,128]{1,0:T(1,128)}', space=vmem, size = 0x12000, scoped, tag = 'internal scratch']
  #allocation2 [shape = 'f32[1,1]{1,0:T(1,128)}', space=vmem, size = 0x200, scoped, tag = 'scratch operand']
  %s0 = inlined_call_operand.vmem [shape: f32[8,32], index: 0, kind: input, shape index: {}]
  %s1 = inlined_call_operand.vmem [shape: s32[8,1], index: 1, kind: input, shape index: {}]
  %s2 = inlined_call_operand.hbm [shape: f32[1,1], index: 2, kind: output, shape index: {}]
  %s3 = sld [smem:[#allocation0]]
  $region26: #{tpu_custom_call.1} parent=0
    _
  %s5 = ssub.s32 1, %s3
  %s6 = scalar_select 0, %s5, %s3
  $region1: #{tpu_custom_call.1} parent=0
    #allocation3 [shape = 'u8[512]{0}', space=vmem, size = 0x400, scoped, tag = 'output window, operand 0, single buffered']
    #allocation4 [shape = 's32[1]{0}', space=sflag, size = 0x4, scoped, tag = 'scoped memory for tpu_custom_call.1']
    %7 = vsyncpa [#allocation4], 0
    // Predicated region
    $region2: #{tpu_custom_call.1} parent=1 // pred_check
      _
    $region3: #{tpu_custom_call.1} parent=1 // pred_check_branch
      %9 = sbr.rel (0) target = $region5
    $region4: #{tpu_custom_call.1} parent=1 // pred_region
      _
    $region5: #{tpu_custom_call.1} parent=1 // pred_fallthru
      _
    // Predicated region
    $region6: #{tpu_custom_call.1} parent=1 // pred_check
      _
    $region7: #{tpu_custom_call.1} parent=1 // pred_check_branch
      %11 = sbr.rel (0) target = $region9
    $region8: #{tpu_custom_call.1} parent=1 // pred_region
      _
    $region9: #{tpu_custom_call.1} parent=1 // pred_fallthru
      _
    %p12 = scmp.eq.s32.totalorder 0, 0
    // Predicated region
    $region10: #{tpu_custom_call.1} parent=1 // pred_check
      %p13 = pneg %p12
    $region11: #{tpu_custom_call.1} parent=1 // pred_check_branch
      %15 = sbr.rel (%p13) target = $region13
    $region12: #{tpu_custom_call.1} parent=1 // pred_region
      %vm16 = vcmask 0
      %17 = vst.msk [vmem:[#allocation2] sm:$0x1] %vm16, 0.0
    $region13: #{tpu_custom_call.1} parent=1 // pred_fallthru
      _
    %v18 = vld [vmem:[%s0] sm:$0xff]
    %v19 = vld [vmem:[%s1] sm:$0xff]
    %vm20 = vcmask 261120
    %v21 = vsel %vm20, %v18, -inf
    %22 = vmax.xlane.f32.xlu0 %v21
    %v23 = vpop.xlane.xlu0 %22
    %v24 = vsub.f32 %v18, %v23
    %v25 = vmul.f32 %v24, 1.442695
    %v26 = vpow.pop %v25
    %v27 = vsel %vm20, %v26, 0.0
    %28 = vadd.xlane.f32.xlu0 %v27
    %v29 = vpop.xlane.xlu0 %28
    %v30 = vlog2.pop %v29
    %v31 = vmul.f32 %v30, 0.6931472
    %v32 = vadd.f32 %v23, %v31
    %v33 = vlaneseq
    %v34 = vand.u32 %v33, 127
    %35 = vset.pattern.permute.xlu0 0
    %36 = vperm.xlu0 %35, %v19
    %v37 = vpop.permute.xlu0 %36
    %vm38 = vcmp.eq.s32.totalorder %v34, %v37
    %v39 = vsel %vm38, %v18, 0.0
    %v40 = vsel %vm20, %v39, 0.0
    %41 = vadd.xlane.f32.xlu0 %v40
    %v42 = vpop.xlane.xlu0 %41
    %v43 = vsel %vm20, %v18, 0.0
    %44 = vadd.xlane.f32.xlu0 %v43
    %v45 = vpop.xlane.xlu0 %44
    %v46 = vrcp.pop 32.0
    %v47 = vmul.f32 %v45, %v46
    %v48 = vmul.f32 %v42, 0.9
    %v49 = vsub.f32 %v32, %v48
    %v50 = vmul.f32 %v47, 0.1
    %v51 = vsub.f32 %v49, %v50
    %v52 = vlaneseq
    %v53 = vshrl.u32 %v52, 7
    %s54 = smul.u32 0, 8
    %v55 = vstv %s54
    %v56 = vadd.s32 %v53, %v55
    %vm57 = vcmp.lt.s32.totalorder %v56, 8
    %v58 = vsel %vm57, %v51, 0.0
    %v59 = vld [vmem:[#allocation2] sm:$0x1]
    %vm60 = vcmask 7168
    %v61 = vsel %vm60, %v58, 0.0
    %62 = vadd.xlane.f32.xlu0 %v61
    %v63 = vpop.xlane.xlu0 %62
    %v64 = vrot.slane %v63, 4
    %v65 = vadd.f32 %v63, %v64
    %v66 = vrot.slane %v65, 2
    %v67 = vadd.f32 %v65, %v66
    %v68 = vrot.slane %v67, 1
    %v69 = vadd.f32 %v67, %v68
    %s70 = vtos %v69
    %v71 = vstv %s70
    %v72 = vadd.f32 %v59, %v71
    %vm73 = vcmask 0
    %74 = vst.msk [vmem:[#allocation2] sm:$0x1] %vm73, %v72
    // Predicated region
    $region14: #{tpu_custom_call.1} parent=1 // pred_check
      %p75 = pneg %p12
    $region15: #{tpu_custom_call.1} parent=1 // pred_check_branch
      %77 = sbr.rel (%p75) target = $region17
    $region16: #{tpu_custom_call.1} parent=1 // pred_region
      %v78 = vld [vmem:[#allocation2] sm:$0x1]
      %v79 = vmul.f32 %v78, 0.125
      %80 = vst.msk [vmem:[#allocation3] sm:$0x1] %vm73, %v79
    $region17: #{tpu_custom_call.1} parent=1 // pred_fallthru
      _
    // Predicated region
    $region18: #{tpu_custom_call.1} parent=1 // pred_check
      _
    $region19: #{tpu_custom_call.1} parent=1 // pred_check_branch
      %82 = sbr.rel (0) target = $region21
    $region20: #{tpu_custom_call.1} parent=1 // pred_region
      %s84 = ssub.s32 16, 16
      %85 = vsyncadd [#allocation4], %s84
      %s87 = sshll.u32 [#allocation3], 4
      %s88 = int_to_ptr.vmem [resolvable:$true] %s87
      %90 = dma.vmem_to_hbm [thread:$0]  %s88, 16, %s2, [#allocation4]
    $region21: #{tpu_custom_call.1} parent=1 // pred_fallthru
      _
    // Predicated region
    $region22: #{tpu_custom_call.1} parent=1 // pred_check
      _
    $region23: #{tpu_custom_call.1} parent=1 // pred_check_branch
      %92 = sbr.rel (0) target = $region25
    $region24: #{tpu_custom_call.1} parent=1 // pred_region
      %93 = dma.done [#allocation4], 16
    $region25: #{tpu_custom_call.1} parent=1 // pred_fallthru
      _
    %94 = vsyncpa [#allocation4], 1

</llo_original>
